<compile_context>
chip_gen: v7x
topology: tpu7x:2x2x1
jax: 0.10.0
libtpu: 0.0.40
codegen_flags: <defaults>
</compile_context>

<pallas_src>
import functools

import jax
import jax.numpy as jnp
from jax.experimental import pallas as pl
from jax.experimental.pallas import tpu as pltpu

EPS = 1e-4  # SobelOperator(epsilon=0.0001)
_MIB = 1024 * 1024


def _round_up(x, m):
    return -(-x // m) * m


def _cdiv(a, b):
    return -(-a // b)


# --------------------------- in-kernel helpers ------------------------------
def _roll(x, shift):
    """Lane roll by a static shift (out[j] = x[(j - shift) mod hw])."""
    if shift == 0:
        return x
    return pltpu.roll(x, shift, axis=1)


def _tree_sum(parts):
    """Balanced pairwise tree sum of a list of equal-shaped arrays."""
    while len(parts) > 1:
        nxt = [parts[i] + parts[i + 1] for i in range(0, len(parts) - 1, 2)]
        if len(parts) % 2:
            nxt.append(parts[-1])
        parts = nxt
    return parts[0]


def _sobel_mag_unscaled(x, masks, shifts):
    """4 * sqrt(gx^2 + gy^2 + eps) on (tile_bc, hw_pad) fused image planes.

    conv_x = [[1,0,-1],[2,0,-2],[1,0,-1]]/4 ; conv_y = [[1,2,1],[0,0,0],[-1,-2,-1]]/4
    applied as zero-padded cross-correlation in separable form.  The 1/4 scale
    is folded out (eps -> 16*eps); the wrapper divides the loss by 4.
    Neighbour reads are lane rolls; `masks` are precomputed {0,1} multipliers
    implementing the zero padding (and killing wrap-around / pad lanes).
    """
    m_l, m_r, m_u, m_d = masks
    s_up, s_down, s_left, s_right = shifts

    x2 = x + x  # reuse 2*x for both smoothing passes

    up = _roll(x, s_up) * m_u        # x[i-1, j]
    down = _roll(x, s_down) * m_d    # x[i+1, j]
    a = up + x2 + down               # vertical smooth
    gx = (_roll(a, s_left) * m_l - _roll(a, s_right) * m_r).astype(jnp.float32)

    left = _roll(x, s_left) * m_l    # x[i, j-1]
    right = _roll(x, s_right) * m_r  # x[i, j+1]
    b = left + x2 + right            # horizontal smooth
    gy = (_roll(b, s_up) * m_u - _roll(b, s_down) * m_d).astype(jnp.float32)

    return jnp.sqrt(gx * gx + gy * gy + jnp.float32(16.0 * EPS))


def grad_loss_kernel(pr_ref, gt_ref, mask_ref, out_ref, *, shifts, cdtype):
    # Resident {0,1} multiplier masks (DMA'd once: constant index_map).
    masks = (mask_ref[0], mask_ref[1], mask_ref[2], mask_ref[3])

    # Upcast/keep dtype after the DMA (bf16 inputs stream at half HBM traffic;
    # on v6e/v7x the smoothing stays bf16 for ~2x VPU throughput).
    gt = gt_ref[...].astype(cdtype)
    pr = pr_ref[...].astype(cdtype)

    diff = jnp.abs(
        _sobel_mag_unscaled(gt, masks, shifts)
        - _sobel_mag_unscaled(pr, masks, shifts)
    )  # float32, == 4 * |gt_sobel - pr_sobel|; 0 on all padded rows/lanes.

    tile_bc, hw_pad = diff.shape
    # Reduce to a lane-dense (8, 128) partial-sum block with balanced trees of
    # aligned vreg adds only (no cross-lane scalar reduce, no carried state).
    row_groups = [diff[k * 8:(k + 1) * 8, :] for k in range(tile_bc // 8)]
    q = _tree_sum(row_groups)                                  # (8, hw_pad)
    lane_groups = [q[:, g * 128:(g + 1) * 128] for g in range(hw_pad // 128)]
    out_ref[...] = _tree_sum(lane_groups)                      # (8, 128)


# ------------------------------- wrapper ------------------------------------
def _build_masks(h, w, hw_pad, tile_bc, cdtype):
    """{0,1} multiplier masks [left, right, up, down] in fused coordinates,
    zeroed on pad lanes (j >= h*w)."""
    j = jnp.arange(hw_pad, dtype=jnp.int32)
    col = j % w
    real = j < h * w
    m_l = (col > 0) & real
    m_r = (col < (w - 1)) & real
    m_u = (j >= w) & real
    m_d = j < (h - 1) * w
    m = jnp.stack([m_l, m_r, m_u, m_d]).astype(cdtype)         # (4, hw_pad)
    return jnp.broadcast_to(m[:, None, :], (4, tile_bc, hw_pad))


def _per_row_live_bytes(hw_pad, in_bytes, cbytes):
    # 2 inputs x 2 pipeline buffers + 4 resident mask planes (counted double-
    # buffered, conservative) + ~10 full-tile f32 intermediates in the body.
    return hw_pad * (2 * 2 * in_bytes + 2 * 4 * cbytes + 10 * 4)


def _choose_tile_bc(bc, hw_pad, in_bytes, cbytes, budget_bytes):
    """Rows per block sized against TOTAL live VMEM bytes, multiple of 8."""
    bc8 = _round_up(bc, 8)
    per_row = _per_row_live_bytes(hw_pad, in_bytes, cbytes)
    cap = max(8, (budget_bytes // per_row) // 8 * 8)
    rows = min(cap, bc8)
    # Prefer a multi-step grid (DMA overlap + v7x megacore) when each block
    # still carries >= ~512 KiB of input per operand.
    min_rows = max(8, _round_up(_cdiv(512 * 1024, hw_pad * in_bytes), 8))
    if rows == bc8 and bc8 >= 2 * min_rows:
        rows = min(cap, max(min_rows, _round_up(_cdiv(bc8, 8), 8)))
    return rows


def grad_loss(pr, gt, *, tile_bc=None, compute_dtype=None):
    b, c, h, w = pr.shape
    assert gt.shape == pr.shape and gt.dtype == pr.dtype
    bc, hw = b * c, h * w
    hw_pad = _round_up(hw, 128)   # always take the pltpu.roll / lane-dense path

    in_dtype = jnp.dtype(pr.dtype)
    if compute_dtype is None:
        compute_dtype = jnp.bfloat16 if in_dtype == jnp.bfloat16 else jnp.float32
    cdtype = jnp.dtype(compute_dtype)
    in_bytes, cbytes = in_dtype.itemsize, cdtype.itemsize

    # VMEM budgeting: 32 MiB limit on v7x (64 MiB physical), 48 MiB on
    # v5e/v6e (128 MiB physical); size blocks to ~half of that.
    try:
        vmem_cap = int(pltpu.get_tpu_info().vmem_capacity_bytes)
    except Exception:
        vmem_cap = 64 * _MIB  # conservative (v7x per-TensorCore)
    vmem_limit = int(min(vmem_cap // 2, 48 * _MIB))
    budget = vmem_limit // 2

    if tile_bc is None:
        tile_bc = _choose_tile_bc(bc, hw_pad, in_bytes, cbytes, budget)
    tile_bc = max(8, _round_up(int(tile_bc), 8))
    bc_pad = _round_up(_round_up(bc, 8), tile_bc)
    num_tiles = bc_pad // tile_bc

    # Free, layout-preserving reshape; keep the input dtype (no f32 pre-cast).
    prf = pr.reshape(bc, hw)
    gtf = gt.reshape(bc, hw)
    if bc_pad != bc or hw_pad != hw:
        # Zero-padded rows/lanes yield identical Sobel magnitude for gt and pr
        # (all masks are zero there) -> |diff| == 0, so the sum is unaffected.
        pad = ((0, bc_pad - bc), (0, hw_pad - hw))
        prf = jnp.pad(prf, pad)
        gtf = jnp.pad(gtf, pad)

    masks = _build_masks(h, w, hw_pad, tile_bc, cdtype)   # (4, tile_bc, hw_pad)

    # Static lane-roll shifts: up, down, left, right (out[j] = x[j - s mod n]).
    shifts = (w % hw_pad, (hw_pad - w) % hw_pad, 1 % hw_pad, (hw_pad - 1) % hw_pad)
    kernel = functools.partial(grad_loss_kernel, shifts=shifts, cdtype=cdtype)

    partials = pl.pallas_call(
        kernel,
        out_shape=jax.ShapeDtypeStruct((num_tiles * 8, 128), jnp.float32),
        grid_spec=pltpu.PrefetchScalarGridSpec(
            num_scalar_prefetch=0,
            grid=(num_tiles,),
            in_specs=[
                pl.BlockSpec((tile_bc, hw_pad), lambda i: (i, 0)),
                pl.BlockSpec((tile_bc, hw_pad), lambda i: (i, 0)),
                # Constant block index -> copied into VMEM once, then resident.
                pl.BlockSpec((4, tile_bc, hw_pad), lambda i: (0, 0, 0)),
            ],
            # Each grid step owns its own output block -> no race, so the grid
            # axis is safely "parallel" (v7x 2-TC sharding; harmless on 1 TC).
            out_specs=pl.BlockSpec((8, 128), lambda i: (i, 0)),
        ),
        compiler_params=pltpu.CompilerParams(
            dimension_semantics=("parallel",),
            vmem_limit_bytes=vmem_limit,
        ),
    )(prf, gtf, masks)

    # F.l1_loss 'mean' over the true element count; extra /4 undoes the folded
    # Sobel 1/4 scale (kernel works on unscaled gradients with 16*eps).
    return jnp.sum(partials) / (4.0 * b * c * h * w)


# ---------------- pure-JAX reference (for correctness check) ----------------
def _sobel_ref(x):
    b, c, h, w = x.shape
    xr = x.reshape(b * c, 1, h, w).astype(jnp.float32)
    kx = jnp.array([[1, 0, -1], [2, 0, -2], [1, 0, -1]], jnp.float32)[None, None] / 4.0
    ky = jnp.array([[1, 2, 1], [0, 0, 0], [-1, -2, -1]], jnp.float32)[None, None] / 4.0
    dn = jax.lax.conv_dimension_numbers(xr.shape, kx.shape, ("NCHW", "OIHW", "NCHW"))
    gx = jax.lax.conv_general_dilated(xr, kx, (1, 1), ((1, 1), (1, 1)), dimension_numbers=dn)
    gy = jax.lax.conv_general_dilated(xr, ky, (1, 1), ((1, 1), (1, 1)), dimension_numbers=dn)
    return jnp.sqrt(gx * gx + gy * gy + EPS).reshape(b, c, h, w)


def _grad_loss_ref(pr, gt):
    return jnp.mean(jnp.abs(_sobel_ref(gt) - _sobel_ref(pr)))


if __name__ == "__main__":
    key = jax.random.PRNGKey(0)
    k1, k2, k3, k4 = jax.random.split(key, 4)

    # 1) f32, 128-aligned hw (16*16=256), single-tile grid.
    pr = jax.random.normal(k1, (2, 4, 16, 16), dtype=jnp.float32)
    gt = jax.random.normal(k2, (2, 4, 16, 16), dtype=jnp.float32)
    loss = jax.block_until_ready(grad_loss(pr, gt))
    ref = jax.block_until_ready(_grad_loss_ref(pr, gt))
    assert loss.shape == ()
    assert jnp.allclose(loss, ref, rtol=1e-5, atol=1e-6), (loss, ref)

    # 2) non-128-aligned hw (9*10=90), padded bc (15->16), multi-tile grid.
    pr2 = jax.random.normal(k3, (3, 5, 9, 10), dtype=jnp.float32)
    gt2 = jax.random.normal(k4, (3, 5, 9, 10), dtype=jnp.float32)
    loss2 = jax.block_until_ready(grad_loss(pr2, gt2, tile_bc=8))
    ref2 = jax.block_until_ready(_grad_loss_ref(pr2, gt2))
    assert jnp.allclose(loss2, ref2, rtol=1e-5, atol=1e-6), (loss2, ref2)

    # 3) bf16 inputs -> bf16 smoothing path (v6e/v7x VPU), looser tolerance.
    pr3, gt3 = pr.astype(jnp.bfloat16), gt.astype(jnp.bfloat16)
    loss3 = jax.block_until_ready(grad_loss(pr3, gt3))
    ref3 = jax.block_until_ready(
        _grad_loss_ref(pr3.astype(jnp.float32), gt3.astype(jnp.float32)))
    assert jnp.allclose(loss3, ref3, rtol=5e-2, atol=5e-3), (loss3, ref3)

    print("KERNEL_OK")
</pallas_src>

<mosaic_0001>
module attributes {stable_mosaic.version = 11 : i64} {
  func.func @grad_loss_kernel(%arg0: i32, %arg1: memref<8x256xf32, #tpu.memory_space<vmem>>, %arg2: memref<8x256xf32, #tpu.memory_space<vmem>>, %arg3: memref<4x8x256xf32, #tpu.memory_space<vmem>>, %arg4: memref<8x128xf32, #tpu.memory_space<vmem>>) attributes {dimension_semantics = [#tpu.dimension_semantics<parallel>], iteration_bounds = array<i64: 1>, scalar_prefetch = 0 : i64, scratch_operands = 0 : i64, tpu.core_type = #tpu.core_type<tc>, window_params = [{transform_indices = @transform_0, window_bounds = array<i64: 8, 256>}, {transform_indices = @transform_1, window_bounds = array<i64: 8, 256>}, {pipeline_mode = #tpu.pipeline_mode<synchronous>, transform_indices = @transform_2, window_bounds = array<i64: 4, 8, 256>}, {transform_indices = @transform_3, window_bounds = array<i64: 8, 128>}]} {
    %c0 = arith.constant 0 : index
    %c0_0 = arith.constant 0 : index
    %c0_1 = arith.constant 0 : index
    %0 = vector.load %arg3[%c0, %c0_0, %c0_1] : memref<4x8x256xf32, #tpu.memory_space<vmem>>, vector<1x8x256xf32>
    %1 = vector.shape_cast %0 : vector<1x8x256xf32> to vector<8x256xf32>
    %c1 = arith.constant 1 : index
    %c0_2 = arith.constant 0 : index
    %c0_3 = arith.constant 0 : index
    %2 = vector.load %arg3[%c1, %c0_2, %c0_3] : memref<4x8x256xf32, #tpu.memory_space<vmem>>, vector<1x8x256xf32>
    %3 = vector.shape_cast %2 : vector<1x8x256xf32> to vector<8x256xf32>
    %c2 = arith.constant 2 : index
    %c0_4 = arith.constant 0 : index
    %c0_5 = arith.constant 0 : index
    %4 = vector.load %arg3[%c2, %c0_4, %c0_5] : memref<4x8x256xf32, #tpu.memory_space<vmem>>, vector<1x8x256xf32>
    %5 = vector.shape_cast %4 : vector<1x8x256xf32> to vector<8x256xf32>
    %c3 = arith.constant 3 : index
    %c0_6 = arith.constant 0 : index
    %c0_7 = arith.constant 0 : index
    %6 = vector.load %arg3[%c3, %c0_6, %c0_7] : memref<4x8x256xf32, #tpu.memory_space<vmem>>, vector<1x8x256xf32>
    %7 = vector.shape_cast %6 : vector<1x8x256xf32> to vector<8x256xf32>
    %c0_8 = arith.constant 0 : index
    %c0_9 = arith.constant 0 : index
    %8 = vector.load %arg2[%c0_8, %c0_9] : memref<8x256xf32, #tpu.memory_space<vmem>>, vector<8x256xf32>
    %c0_10 = arith.constant 0 : index
    %c0_11 = arith.constant 0 : index
    %9 = vector.load %arg1[%c0_10, %c0_11] : memref<8x256xf32, #tpu.memory_space<vmem>>, vector<8x256xf32>
    %10 = arith.addf %8, %8 : vector<8x256xf32>
    %c16_i32 = arith.constant 16 : i32
    %11 = tpu.dynamic_rotate %8 by %c16_i32 dim 1 : vector<8x256xf32>, i32 -> vector<8x256xf32>
    %12 = arith.mulf %11, %5 : vector<8x256xf32>
    %c240_i32 = arith.constant 240 : i32
    %13 = tpu.dynamic_rotate %8 by %c240_i32 dim 1 : vector<8x256xf32>, i32 -> vector<8x256xf32>
    %14 = arith.mulf %13, %7 : vector<8x256xf32>
    %15 = arith.addf %12, %10 : vector<8x256xf32>
    %16 = arith.addf %15, %14 : vector<8x256xf32>
    %c1_i32 = arith.constant 1 : i32
    %17 = tpu.dynamic_rotate %16 by %c1_i32 dim 1 : vector<8x256xf32>, i32 -> vector<8x256xf32>
    %18 = arith.mulf %17, %1 : vector<8x256xf32>
    %c255_i32 = arith.constant 255 : i32
    %19 = tpu.dynamic_rotate %16 by %c255_i32 dim 1 : vector<8x256xf32>, i32 -> vector<8x256xf32>
    %20 = arith.mulf %19, %3 : vector<8x256xf32>
    %21 = arith.subf %18, %20 : vector<8x256xf32>
    %c1_i32_12 = arith.constant 1 : i32
    %22 = tpu.dynamic_rotate %8 by %c1_i32_12 dim 1 : vector<8x256xf32>, i32 -> vector<8x256xf32>
    %23 = arith.mulf %22, %1 : vector<8x256xf32>
    %c255_i32_13 = arith.constant 255 : i32
    %24 = tpu.dynamic_rotate %8 by %c255_i32_13 dim 1 : vector<8x256xf32>, i32 -> vector<8x256xf32>
    %25 = arith.mulf %24, %3 : vector<8x256xf32>
    %26 = arith.addf %23, %10 : vector<8x256xf32>
    %27 = arith.addf %26, %25 : vector<8x256xf32>
    %c16_i32_14 = arith.constant 16 : i32
    %28 = tpu.dynamic_rotate %27 by %c16_i32_14 dim 1 : vector<8x256xf32>, i32 -> vector<8x256xf32>
    %29 = arith.mulf %28, %5 : vector<8x256xf32>
    %c240_i32_15 = arith.constant 240 : i32
    %30 = tpu.dynamic_rotate %27 by %c240_i32_15 dim 1 : vector<8x256xf32>, i32 -> vector<8x256xf32>
    %31 = arith.mulf %30, %7 : vector<8x256xf32>
    %32 = arith.subf %29, %31 : vector<8x256xf32>
    %33 = arith.mulf %21, %21 : vector<8x256xf32>
    %34 = arith.mulf %32, %32 : vector<8x256xf32>
    %35 = arith.addf %33, %34 : vector<8x256xf32>
    %cst = arith.constant 1.600000e-03 : f32
    %36 = vector.broadcast %cst : f32 to vector<8x256xf32>
    %37 = arith.addf %35, %36 : vector<8x256xf32>
    %38 = math.sqrt %37 : vector<8x256xf32>
    %39 = arith.addf %9, %9 : vector<8x256xf32>
    %c16_i32_16 = arith.constant 16 : i32
    %40 = tpu.dynamic_rotate %9 by %c16_i32_16 dim 1 : vector<8x256xf32>, i32 -> vector<8x256xf32>
    %41 = arith.mulf %40, %5 : vector<8x256xf32>
    %c240_i32_17 = arith.constant 240 : i32
    %42 = tpu.dynamic_rotate %9 by %c240_i32_17 dim 1 : vector<8x256xf32>, i32 -> vector<8x256xf32>
    %43 = arith.mulf %42, %7 : vector<8x256xf32>
    %44 = arith.addf %41, %39 : vector<8x256xf32>
    %45 = arith.addf %44, %43 : vector<8x256xf32>
    %c1_i32_18 = arith.constant 1 : i32
    %46 = tpu.dynamic_rotate %45 by %c1_i32_18 dim 1 : vector<8x256xf32>, i32 -> vector<8x256xf32>
    %47 = arith.mulf %46, %1 : vector<8x256xf32>
    %c255_i32_19 = arith.constant 255 : i32
    %48 = tpu.dynamic_rotate %45 by %c255_i32_19 dim 1 : vector<8x256xf32>, i32 -> vector<8x256xf32>
    %49 = arith.mulf %48, %3 : vector<8x256xf32>
    %50 = arith.subf %47, %49 : vector<8x256xf32>
    %c1_i32_20 = arith.constant 1 : i32
    %51 = tpu.dynamic_rotate %9 by %c1_i32_20 dim 1 : vector<8x256xf32>, i32 -> vector<8x256xf32>
    %52 = arith.mulf %51, %1 : vector<8x256xf32>
    %c255_i32_21 = arith.constant 255 : i32
    %53 = tpu.dynamic_rotate %9 by %c255_i32_21 dim 1 : vector<8x256xf32>, i32 -> vector<8x256xf32>
    %54 = arith.mulf %53, %3 : vector<8x256xf32>
    %55 = arith.addf %52, %39 : vector<8x256xf32>
    %56 = arith.addf %55, %54 : vector<8x256xf32>
    %c16_i32_22 = arith.constant 16 : i32
    %57 = tpu.dynamic_rotate %56 by %c16_i32_22 dim 1 : vector<8x256xf32>, i32 -> vector<8x256xf32>
    %58 = arith.mulf %57, %5 : vector<8x256xf32>
    %c240_i32_23 = arith.constant 240 : i32
    %59 = tpu.dynamic_rotate %56 by %c240_i32_23 dim 1 : vector<8x256xf32>, i32 -> vector<8x256xf32>
    %60 = arith.mulf %59, %7 : vector<8x256xf32>
    %61 = arith.subf %58, %60 : vector<8x256xf32>
    %62 = arith.mulf %50, %50 : vector<8x256xf32>
    %63 = arith.mulf %61, %61 : vector<8x256xf32>
    %64 = arith.addf %62, %63 : vector<8x256xf32>
    %cst_24 = arith.constant 1.600000e-03 : f32
    %65 = vector.broadcast %cst_24 : f32 to vector<8x256xf32>
    %66 = arith.addf %64, %65 : vector<8x256xf32>
    %67 = math.sqrt %66 : vector<8x256xf32>
    %68 = arith.subf %38, %67 : vector<8x256xf32>
    %69 = math.absf %68 : vector<8x256xf32>
    %70 = vector.extract_strided_slice %69 {offsets = [0, 0], sizes = [8, 128], strides = [1, 1]} : vector<8x256xf32> to vector<8x128xf32>
    %71 = vector.extract_strided_slice %69 {offsets = [0, 128], sizes = [8, 128], strides = [1, 1]} : vector<8x256xf32> to vector<8x128xf32>
    %72 = arith.addf %70, %71 : vector<8x128xf32>
    %c0_25 = arith.constant 0 : index
    %c0_26 = arith.constant 0 : index
    %73 = vector.load %arg4[%c0_25, %c0_26] : memref<8x128xf32, #tpu.memory_space<vmem>>, vector<8x128xf32>
    tpu.vector_store %arg4[%c0_25, %c0_26], %72 {strides = array<i32>} : memref<8x128xf32, #tpu.memory_space<vmem>>, vector<8x128xf32>,
    return
  }
  func.func @transform_0(%arg0: i32) -> (i32, i32) {
    %c0_i32 = arith.constant 0 : i32
    %c0_i32_0 = arith.constant 0 : i32
    return %arg0, %c0_i32 : i32, i32
  }
  func.func @transform_1(%arg0: i32) -> (i32, i32) {
    %c0_i32 = arith.constant 0 : i32
    %c0_i32_0 = arith.constant 0 : i32
    return %arg0, %c0_i32 : i32, i32
  }
  func.func @transform_2(%arg0: i32) -> (i32, i32, i32) {
    %c0_i32 = arith.constant 0 : i32
    %c0_i32_0 = arith.constant 0 : i32
    %c0_i32_1 = arith.constant 0 : i32
    %c0_i32_2 = arith.constant 0 : i32
    return %c0_i32, %c0_i32_0, %c0_i32_1 : i32, i32, i32
  }
  func.func @transform_3(%arg0: i32) -> (i32, i32) {
    %c0_i32 = arith.constant 0 : i32
    %c0_i32_0 = arith.constant 0 : i32
    return %arg0, %c0_i32 : i32, i32
  }
}

</mosaic_0001>

<llo_original>
// kernel: tpu_custom_call.1
$region0: #{tpu_custom_call.1}
  #allocation0 [shape = 'u32[]', space=smem, size = 0x4, offset = 0x4, fixed_abs, tag = 'smem constant byte address 0x4 - core index']
  #allocation1 [shape = 'u32[144,128]{1,0:T(1,128)}', space=vmem, size = 0x12000, scoped, tag = 'internal scratch']
  %s0 = inlined_call_operand.hbm [shape: f32[8,256], index: 0, kind: input, shape index: {}]
  %s1 = inlined_call_operand.hbm [shape: f32[8,256], index: 1, kind: input, shape index: {}]
  %s2 = inlined_call_operand.hbm [shape: f32[4,8,256], index: 2, kind: input, shape index: {}]
  %s3 = inlined_call_operand.hbm [shape: f32[8,128], index: 3, kind: output, shape index: {}]
  %s4 = sld [smem:[#allocation0]]
  $region34: #{tpu_custom_call.1} parent=0
    _
  %s6 = ssub.s32 1, %s4
  %s7 = scalar_select 0, %s6, %s4
  $region1: #{tpu_custom_call.1} parent=0
    #allocation2 [shape = 'u8[8192]{0}', space=vmem, size = 0x2000, scoped, tag = 'input window, operand 0, single buffered']
    #allocation3 [shape = 's32[1]{0}', space=sflag, size = 0x4, scoped, tag = 'scoped memory for tpu_custom_call.1']
    #allocation4 [shape = 's32[1]{0}', space=sflag, size = 0x4, scoped, tag = 'scoped memory for tpu_custom_call.1']
    #allocation5 [shape = 'u8[8192]{0}', space=vmem, size = 0x2000, scoped, tag = 'input window, operand 1, single buffered']
    #allocation6 [shape = 's32[1]{0}', space=sflag, size = 0x4, scoped, tag = 'scoped memory for tpu_custom_call.1']
    #allocation7 [shape = 'u8[32768]{0}', space=vmem, size = 0x8000, scoped, tag = 'input window, operand 2, single buffered']
    #allocation8 [shape = 'u8[4096]{0}', space=vmem, size = 0x1000, scoped, tag = 'output window, operand 0, single buffered']
    %8 = vsyncpa [#allocation3], 0
    %9 = vsyncpa [#allocation6], 0
    %10 = vsyncpa [#allocation4], 0
    // Predicated region
    $region2: #{tpu_custom_call.1} parent=1 // pred_check
      _
    $region3: #{tpu_custom_call.1} parent=1 // pred_check_branch
      %12 = sbr.rel (0) target = $region5
    $region4: #{tpu_custom_call.1} parent=1 // pred_region
      %s14 = ssub.s32 256, 256
      %15 = vsyncadd [#allocation3], %s14
      %s17 = sshll.u32 [#allocation2], 4
      %s18 = int_to_ptr.vmem [resolvable:$true] %s17
      %20 = dma.hbm_to_vmem [thread:$0]  %s0, 256, %s18, [#allocation3]
    $region5: #{tpu_custom_call.1} parent=1 // pred_fallthru
      _
    // Predicated region
    $region6: #{tpu_custom_call.1} parent=1 // pred_check
      _
    $region7: #{tpu_custom_call.1} parent=1 // pred_check_branch
      %22 = sbr.rel (0) target = $region9
    $region8: #{tpu_custom_call.1} parent=1 // pred_region
      %s24 = ssub.s32 256, 256
      %25 = vsyncadd [#allocation6], %s24
      %s27 = sshll.u32 [#allocation5], 4
      %s28 = int_to_ptr.vmem [resolvable:$true] %s27
      %30 = dma.hbm_to_vmem [thread:$0]  %s1, 256, %s28, [#allocation6]
    $region9: #{tpu_custom_call.1} parent=1 // pred_fallthru
      _
    // Predicated region
    $region10: #{tpu_custom_call.1} parent=1 // pred_check
      _
    $region11: #{tpu_custom_call.1} parent=1 // pred_check_branch
      %32 = sbr.rel (0) target = $region13
    $region12: #{tpu_custom_call.1} parent=1 // pred_region
      %s34 = ssub.s32 1024, 1024
      %35 = vsyncadd [#allocation6], %s34
      %s36 = sshll.u32 [#allocation7], 4
      %s37 = int_to_ptr.vmem [resolvable:$true] %s36
      %42 = dma.hbm_to_vmem [thread:$0]  %s2, 1024, %s37, [#allocation6], 256, 256, 16
    $region13: #{tpu_custom_call.1} parent=1 // pred_fallthru
      _
    // Predicated region
    $region14: #{tpu_custom_call.1} parent=1 // pred_check
      _
    $region15: #{tpu_custom_call.1} parent=1 // pred_check_branch
      %44 = sbr.rel (0) target = $region17
    $region16: #{tpu_custom_call.1} parent=1 // pred_region
      %45 = dma.done [#allocation3], 256
    $region17: #{tpu_custom_call.1} parent=1 // pred_fallthru
      _
    // Predicated region
    $region18: #{tpu_custom_call.1} parent=1 // pred_check
      _
    $region19: #{tpu_custom_call.1} parent=1 // pred_check_branch
      %47 = sbr.rel (0) target = $region21
    $region20: #{tpu_custom_call.1} parent=1 // pred_region
      %48 = dma.done [#allocation6], 256
    $region21: #{tpu_custom_call.1} parent=1 // pred_fallthru
      _
    // Predicated region
    $region22: #{tpu_custom_call.1} parent=1 // pred_check
      _
    $region23: #{tpu_custom_call.1} parent=1 // pred_check_branch
      %50 = sbr.rel (0) target = $region25
    $region24: #{tpu_custom_call.1} parent=1 // pred_region
      %51 = dma.done [#allocation6], 1024
    $region25: #{tpu_custom_call.1} parent=1 // pred_fallthru
      _
    %v52 = vld [vmem:[#allocation7] sm:$0xff]
    %v53 = vld [vmem:[#allocation7 + $0x8] sm:$0xff]
    %s54 = scalar_lea.vmem [#allocation7], 16
    %v55 = vld [vmem:[%s54] sm:$0xff]
    %v56 = vld [vmem:[%s54 + $0x8] sm:$0xff]
    %s57 = scalar_lea.vmem [#allocation7], 32
    %v58 = vld [vmem:[%s57] sm:$0xff]
    %v59 = vld [vmem:[%s57 + $0x8] sm:$0xff]
    %s60 = scalar_lea.vmem [#allocation7], 48
    %v61 = vld [vmem:[%s60] sm:$0xff]
    %v62 = vld [vmem:[%s60 + $0x8] sm:$0xff]
    %v63 = vld [vmem:[#allocation5] sm:$0xff]
    %v64 = vld [vmem:[#allocation5 + $0x8] sm:$0xff]
    %v65 = vld [vmem:[#allocation2] sm:$0xff]
    %v66 = vld [vmem:[#allocation2 + $0x8] sm:$0xff]
    %v67 = vadd.f32 %v63, %v63
    %v68 = vadd.f32 %v64, %v64
    %69 = vrot.lane.b32.xlu0 %v63, 16
    %v70 = vpop.permute.xlu0 %69
    %71 = vrot.lane.b32.xlu0 %v64, 16
    %v72 = vpop.permute.xlu0 %71
    %v73 = vlaneseq
    %v74 = vand.u32 %v73, 127
    %vm75 = vcmp.lt.s32.totalorder %v74, 16
    %v76 = vsel %vm75, %v70, %v72
    %v77 = vsel %vm75, %v72, %v70
    %v78 = vmul.f32 %v77, %v58
    %v79 = vmul.f32 %v76, %v59
    %80 = vrot.lane.b32.xlu0 %v63, 112
    %v81 = vpop.permute.xlu0 %80
    %82 = vrot.lane.b32.xlu0 %v64, 112
    %v83 = vpop.permute.xlu0 %82
    %vm84 = vcmp.lt.s32.totalorder %v74, 112
    %v85 = vsel %vm84, %v81, %v83
    %v86 = vsel %vm84, %v83, %v81
    %v87 = vmul.f32 %v85, %v61
    %v88 = vmul.f32 %v86, %v62
    %v89 = vadd.f32 %v78, %v67
    %v90 = vadd.f32 %v79, %v68
    %v91 = vadd.f32 %v89, %v87
    %v92 = vadd.f32 %v90, %v88
    %93 = vrot.lane.b32.xlu0 %v91, 1
    %v94 = vpop.permute.xlu0 %93
    %95 = vrot.lane.b32.xlu0 %v92, 1
    %v96 = vpop.permute.xlu0 %95
    %vm97 = vcmp.lt.s32.totalorder %v74, 1
    %v98 = vsel %vm97, %v94, %v96
    %v99 = vsel %vm97, %v96, %v94
    %v100 = vmul.f32 %v99, %v52
    %v101 = vmul.f32 %v98, %v53
    %102 = vrot.lane.b32.xlu0 %v91, 127
    %v103 = vpop.permute.xlu0 %102
    %104 = vrot.lane.b32.xlu0 %v92, 127
    %v105 = vpop.permute.xlu0 %104
    %vm106 = vcmp.lt.s32.totalorder %v74, 127
    %v107 = vsel %vm106, %v103, %v105
    %v108 = vsel %vm106, %v105, %v103
    %v109 = vmul.f32 %v107, %v55
    %v110 = vmul.f32 %v108, %v56
    %v111 = vsub.f32 %v100, %v109
    %v112 = vsub.f32 %v101, %v110
    %113 = vrot.lane.b32.xlu0 %v63, 1
    %v114 = vpop.permute.xlu0 %113
    %115 = vrot.lane.b32.xlu0 %v64, 1
    %v116 = vpop.permute.xlu0 %115
    %v117 = vsel %vm97, %v114, %v116
    %v118 = vsel %vm97, %v116, %v114
    %v119 = vmul.f32 %v118, %v52
    %v120 = vmul.f32 %v117, %v53
    %121 = vrot.lane.b32.xlu0 %v63, 127
    %v122 = vpop.permute.xlu0 %121
    %123 = vrot.lane.b32.xlu0 %v64, 127
    %v124 = vpop.permute.xlu0 %123
    %v125 = vsel %vm106, %v122, %v124
    %v126 = vsel %vm106, %v124, %v122
    %v127 = vmul.f32 %v125, %v55
    %v128 = vmul.f32 %v126, %v56
    %v129 = vadd.f32 %v119, %v67
    %v130 = vadd.f32 %v120, %v68
    %v131 = vadd.f32 %v129, %v127
    %v132 = vadd.f32 %v130, %v128
    %133 = vrot.lane.b32.xlu0 %v131, 16
    %v134 = vpop.permute.xlu0 %133
    %135 = vrot.lane.b32.xlu0 %v132, 16
    %v136 = vpop.permute.xlu0 %135
    %v137 = vsel %vm75, %v134, %v136
    %v138 = vsel %vm75, %v136, %v134
    %v139 = vmul.f32 %v138, %v58
    %v140 = vmul.f32 %v137, %v59
    %141 = vrot.lane.b32.xlu0 %v131, 112
    %v142 = vpop.permute.xlu0 %141
    %143 = vrot.lane.b32.xlu0 %v132, 112
    %v144 = vpop.permute.xlu0 %143
    %v145 = vsel %vm84, %v142, %v144
    %v146 = vsel %vm84, %v144, %v142
    %v147 = vmul.f32 %v145, %v61
    %v148 = vmul.f32 %v146, %v62
    %v149 = vsub.f32 %v139, %v147
    %v150 = vsub.f32 %v140, %v148
    %v151 = vmul.f32 %v111, %v111
    %v152 = vmul.f32 %v112, %v112
    %v153 = vmul.f32 %v149, %v149
    %v154 = vmul.f32 %v150, %v150
    %v155 = vadd.f32 %v151, %v153
    %v156 = vadd.f32 %v152, %v154
    %v157 = vadd.f32 %v155, 0.0016
    %v158 = vadd.f32 %v156, 0.0016
    %v159 = vrsqrt.pop %v157
    %v160 = vmul.f32 %v157, %v159
    %vm161 = vcmp.eq.f32.partialorder %v157, inf
    %v162 = vsel %vm161, %v157, %v160
    %vm163 = vcmp.eq.f32.partialorder %v157, 0.0
    %v164 = vand.u32 %v157, 2147483648
    %v165 = vsel %vm163, %v164, %v162
    %v166 = vrsqrt.pop %v158
    %v167 = vmul.f32 %v158, %v166
    %vm168 = vcmp.eq.f32.partialorder %v158, inf
    %v169 = vsel %vm168, %v158, %v167
    %vm170 = vcmp.eq.f32.partialorder %v158, 0.0
    %v171 = vand.u32 %v158, 2147483648
    %v172 = vsel %vm170, %v171, %v169
    %v173 = vadd.f32 %v65, %v65
    %v174 = vadd.f32 %v66, %v66
    %175 = vrot.lane.b32.xlu0 %v65, 16
    %v176 = vpop.permute.xlu0 %175
    %177 = vrot.lane.b32.xlu0 %v66, 16
    %v178 = vpop.permute.xlu0 %177
    %v179 = vsel %vm75, %v176, %v178
    %v180 = vsel %vm75, %v178, %v176
    %v181 = vmul.f32 %v180, %v58
    %v182 = vmul.f32 %v179, %v59
    %183 = vrot.lane.b32.xlu0 %v65, 112
    %v184 = vpop.permute.xlu0 %183
    %185 = vrot.lane.b32.xlu0 %v66, 112
    %v186 = vpop.permute.xlu0 %185
    %v187 = vsel %vm84, %v184, %v186
    %v188 = vsel %vm84, %v186, %v184
    %v189 = vmul.f32 %v187, %v61
    %v190 = vmul.f32 %v188, %v62
    %v191 = vadd.f32 %v181, %v173
    %v192 = vadd.f32 %v182, %v174
    %v193 = vadd.f32 %v191, %v189
    %v194 = vadd.f32 %v192, %v190
    %195 = vrot.lane.b32.xlu0 %v193, 1
    %v196 = vpop.permute.xlu0 %195
    %197 = vrot.lane.b32.xlu0 %v194, 1
    %v198 = vpop.permute.xlu0 %197
    %v199 = vsel %vm97, %v196, %v198
    %v200 = vsel %vm97, %v198, %v196
    %v201 = vmul.f32 %v200, %v52
    %v202 = vmul.f32 %v199, %v53
    %203 = vrot.lane.b32.xlu0 %v193, 127
    %v204 = vpop.permute.xlu0 %203
    %205 = vrot.lane.b32.xlu0 %v194, 127
    %v206 = vpop.permute.xlu0 %205
    %v207 = vsel %vm106, %v204, %v206
    %v208 = vsel %vm106, %v206, %v204
    %v209 = vmul.f32 %v207, %v55
    %v210 = vmul.f32 %v208, %v56
    %v211 = vsub.f32 %v201, %v209
    %v212 = vsub.f32 %v202, %v210
    %213 = vrot.lane.b32.xlu0 %v65, 1
    %v214 = vpop.permute.xlu0 %213
    %215 = vrot.lane.b32.xlu0 %v66, 1
    %v216 = vpop.permute.xlu0 %215
    %v217 = vsel %vm97, %v214, %v216
    %v218 = vsel %vm97, %v216, %v214
    %v219 = vmul.f32 %v218, %v52
    %v220 = vmul.f32 %v217, %v53
    %221 = vrot.lane.b32.xlu0 %v65, 127
    %v222 = vpop.permute.xlu0 %221
    %223 = vrot.lane.b32.xlu0 %v66, 127
    %v224 = vpop.permute.xlu0 %223
    %v225 = vsel %vm106, %v222, %v224
    %v226 = vsel %vm106, %v224, %v222
    %v227 = vmul.f32 %v225, %v55
    %v228 = vmul.f32 %v226, %v56
    %v229 = vadd.f32 %v219, %v173
    %v230 = vadd.f32 %v220, %v174
    %v231 = vadd.f32 %v229, %v227
    %v232 = vadd.f32 %v230, %v228
    %233 = vrot.lane.b32.xlu0 %v231, 16
    %v234 = vpop.permute.xlu0 %233
    %235 = vrot.lane.b32.xlu0 %v232, 16
    %v236 = vpop.permute.xlu0 %235
    %v237 = vsel %vm75, %v234, %v236
    %v238 = vsel %vm75, %v236, %v234
    %v239 = vmul.f32 %v238, %v58
    %v240 = vmul.f32 %v237, %v59
    %241 = vrot.lane.b32.xlu0 %v231, 112
    %v242 = vpop.permute.xlu0 %241
    %243 = vrot.lane.b32.xlu0 %v232, 112
    %v244 = vpop.permute.xlu0 %243
    %v245 = vsel %vm84, %v242, %v244
    %v246 = vsel %vm84, %v244, %v242
    %v247 = vmul.f32 %v245, %v61
    %v248 = vmul.f32 %v246, %v62
    %v249 = vsub.f32 %v239, %v247
    %v250 = vsub.f32 %v240, %v248
    %v251 = vmul.f32 %v211, %v211
    %v252 = vmul.f32 %v212, %v212
    %v253 = vmul.f32 %v249, %v249
    %v254 = vmul.f32 %v250, %v250
    %v255 = vadd.f32 %v251, %v253
    %v256 = vadd.f32 %v252, %v254
    %v257 = vadd.f32 %v255, 0.0016
    %v258 = vadd.f32 %v256, 0.0016
    %v259 = vrsqrt.pop %v257
    %v260 = vmul.f32 %v257, %v259
    %vm261 = vcmp.eq.f32.partialorder %v257, inf
    %v262 = vsel %vm261, %v257, %v260
    %vm263 = vcmp.eq.f32.partialorder %v257, 0.0
    %v264 = vand.u32 %v257, 2147483648
    %v265 = vsel %vm263, %v264, %v262
    %v266 = vrsqrt.pop %v258
    %v267 = vmul.f32 %v258, %v266
    %vm268 = vcmp.eq.f32.partialorder %v258, inf
    %v269 = vsel %vm268, %v258, %v267
    %vm270 = vcmp.eq.f32.partialorder %v258, 0.0
    %v271 = vand.u32 %v258, 2147483648
    %v272 = vsel %vm270, %v271, %v269
    %v273 = vsub.f32 %v165, %v265
    %v274 = vsub.f32 %v172, %v272
    %v275 = vand.u32 2147483647, %v273
    %v276 = vand.u32 2147483647, %v274
    %v277 = vadd.f32 %v275, %v276
    %278 = vst [vmem:[#allocation8] sm:$0xff] %v277
    // Predicated region
    $region26: #{tpu_custom_call.1} parent=1 // pred_check
      _
    $region27: #{tpu_custom_call.1} parent=1 // pred_check_branch
      %280 = sbr.rel (0) target = $region29
    $region28: #{tpu_custom_call.1} parent=1 // pred_region
      %s282 = ssub.s32 128, 128
      %283 = vsyncadd [#allocation4], %s282
      %s285 = sshll.u32 [#allocation8], 4
      %s286 = int_to_ptr.vmem [resolvable:$true] %s285
      %288 = dma.vmem_to_hbm [thread:$0]  %s286, 128, %s3, [#allocation4]
    $region29: #{tpu_custom_call.1} parent=1 // pred_fallthru
      _
    // Predicated region
    $region30: #{tpu_custom_call.1} parent=1 // pred_check
      _
    $region31: #{tpu_custom_call.1} parent=1 // pred_check_branch
      %290 = sbr.rel (0) target = $region33
    $region32: #{tpu_custom_call.1} parent=1 // pred_region
      %291 = dma.done [#allocation4], 128
    $region33: #{tpu_custom_call.1} parent=1 // pred_fallthru
      _
    %292 = vsyncpa [#allocation3], 1
    %293 = vsyncpa [#allocation6], 1
    %294 = vsyncpa [#allocation4], 1

</llo_original>
